<compile_context>
chip_gen: v5e
topology: v5e:2x2
jax: 0.10.0
libtpu: 0.0.40
codegen_flags: <defaults>
</compile_context>

<pallas_src>
import jax
import jax.numpy as jnp
from jax import lax
from jax.experimental import pallas as pl
from jax.experimental.pallas import tpu as pltpu


LANE = 128
SUBLANE = 8
# 1024 packed rows * 128 lanes * 4B = 512 KiB per f32 tile (86% of streaming
# roofline per measurements); double-buffered in+out ~2 MiB.
_TILE_PACKED_ROWS = 1024
_VMEM_LIMIT_BYTES = 32 * 1024 * 1024


def _cdiv(a, b):
    return -(-a // b)


def _round_up(x, m):
    return _cdiv(x, m) * m


def _pack_factor(dout):
    """How many output rows fit side-by-side in one 128-lane vreg."""
    if dout < LANE and LANE % dout == 0:
        return LANE // dout
    # NOTE: dout values that do not divide 128 (e.g. 48, 96) fall back to
    # pack=1 -> masked partial stores.  Correct, but a hidden perf cliff.
    return 1


def _pack_plan(n_rows, dout, tile_cap=_TILE_PACKED_ROWS):
    pack = _pack_factor(dout)
    rp = _round_up(max(_cdiv(n_rows, pack), 1), SUBLANE)
    tp = min(tile_cap, rp)
    rp = _round_up(rp, tp)
    return pack, rp, tp


def _pack_rows(x, pack, rp):
    """Zero-pad rows and reshape [R, D] -> [rp, pack*D]."""
    r, _ = x.shape
    r_pad = rp * pack
    if r_pad != r:                       # pad only when actually needed
        x = jnp.pad(x, ((0, r_pad - r), (0, 0)))
    return x.reshape(rp, -1)


def _unpack_rows(y, pack, dout, r):
    y = y.reshape(y.shape[0] * pack, dout)
    if y.shape[0] != r:                  # slice only when actually needed
        y = y[:r]
    return y


def _block_diag(w, pack):
    """kron(I_pack, W): packed block-diagonal weight for the lane-dense matmul."""
    if pack == 1:
        return w
    return jnp.kron(jnp.eye(pack, dtype=w.dtype), w)


def _tile_vec(v, pack):
    return jnp.tile(v.reshape(1, -1), (1, pack))


# ----------------------------------------------------------------------------
# Kernel 1: node linear encoder  y = x @ W_bd + b   (lane-dense packed layout)
# ----------------------------------------------------------------------------
def _linear_kernel(x_ref, w_ref, b_ref, o_ref):
    acc = jnp.dot(x_ref[...], w_ref[...], preferred_element_type=jnp.float32)
    o_ref[...] = (acc + b_ref[...]).astype(o_ref.dtype)


def linear_encode(x, w, b, *, tile_packed_rows=_TILE_PACKED_ROWS,
                  out_dtype=jnp.float32):
    """x: [R, Din], w: [Din, Dout], b: [Dout] -> [R, Dout]."""
    r, din = x.shape
    dout = w.shape[1]
    pack, rp, tp = _pack_plan(r, dout, tile_packed_rows)
    dk, dxk = pack * dout, pack * din

    xk = _pack_rows(x.astype(jnp.float32), pack, rp)
    wk = _block_diag(w.astype(jnp.float32), pack)
    bk = _tile_vec(b.astype(jnp.float32), pack)

    out = pl.pallas_call(
        _linear_kernel,
        out_shape=jax.ShapeDtypeStruct((rp, dk), out_dtype),
        grid_spec=pltpu.PrefetchScalarGridSpec(
            num_scalar_prefetch=0,
            grid=(rp // tp,),
            in_specs=[
                pl.BlockSpec((tp, dxk), lambda i: (i, 0)),   # packed row tile
                pl.BlockSpec((dxk, dk), lambda i: (0, 0)),   # block-diag weight
                pl.BlockSpec((1, dk), lambda i: (0, 0)),     # packed bias
            ],
            out_specs=pl.BlockSpec((tp, dk), lambda i: (i, 0)),
        ),
        compiler_params=pltpu.CompilerParams(
            dimension_semantics=("parallel",),
            vmem_limit_bytes=_VMEM_LIMIT_BYTES),
    )(xk, wk, bk)
    return _unpack_rows(out, pack, dout, r)


# ----------------------------------------------------------------------------
# Kernel 2 (edge pass 1): stats-only.  Accumulates per-feature sum / sumsq of
# the *bias-shifted* encode (enc - b = x @ W_bd) into resident accumulators.
# Zero-padded rows give x@W_bd == 0, so no masking is needed.
# ----------------------------------------------------------------------------
def _edge_stats_kernel(x_ref, w_ref, sum_ref, sumsq_ref):
    @pl.when(pl.program_id(0) == 0)
    def _init():
        sum_ref[...] = jnp.zeros_like(sum_ref)
        sumsq_ref[...] = jnp.zeros_like(sumsq_ref)

    acc = jnp.dot(x_ref[...], w_ref[...], preferred_element_type=jnp.float32)
    sum_ref[...] += jnp.sum(acc, axis=0, keepdims=True)
    sumsq_ref[...] += jnp.sum(acc * acc, axis=0, keepdims=True)


# ----------------------------------------------------------------------------
# Kernel 3 (edge pass 2): recompute encode and apply folded BN affine.
#   o = (x @ W_bd) * scale + shift,  shift = beta - mean_shifted * scale
# (bias b is folded into shift; the un-normalized encode is never written.)
# ----------------------------------------------------------------------------
def _edge_norm_kernel(x_ref, w_ref, ss_ref, o_ref):
    acc = jnp.dot(x_ref[...], w_ref[...], preferred_element_type=jnp.float32)
    ss = ss_ref[...]
    o_ref[...] = (acc * ss[0:1, :] + ss[1:2, :]).astype(o_ref.dtype)


def edge_encode_bn(e, w, b, gamma, beta, *, eps=1e-5,
                   tile_packed_rows=_TILE_PACKED_ROWS, out_dtype=jnp.float32):
    """Fused LinearEdgeEncoder + BatchNorm1d (training-mode batch stats)."""
    r, din = e.shape
    dout = w.shape[1]
    pack, rp, tp = _pack_plan(r, dout, tile_packed_rows)
    dk, dxk = pack * dout, pack * din

    ek = _pack_rows(e.astype(jnp.float32), pack, rp)
    wk = _block_diag(w.astype(jnp.float32), pack)
    grid = (rp // tp,)

    # Pass 1: stats only.  Reads the tiny (rp, dxk) packed input, writes just
    # 2 * 128 floats.  Resident accumulator outputs -> "arbitrary" grid axis.
    s1, s2 = pl.pallas_call(
        _edge_stats_kernel,
        out_shape=(jax.ShapeDtypeStruct((1, dk), jnp.float32),
                   jax.ShapeDtypeStruct((1, dk), jnp.float32)),
        grid_spec=pltpu.PrefetchScalarGridSpec(
            num_scalar_prefetch=0,
            grid=grid,
            in_specs=[
                pl.BlockSpec((tp, dxk), lambda i: (i, 0)),
                pl.BlockSpec((dxk, dk), lambda i: (0, 0)),
            ],
            out_specs=[
                pl.BlockSpec((1, dk), lambda i: (0, 0)),   # resident sum acc
                pl.BlockSpec((1, dk), lambda i: (0, 0)),   # resident sumsq acc
            ],
        ),
        compiler_params=pltpu.CompilerParams(
            dimension_semantics=("arbitrary",),
            vmem_limit_bytes=_VMEM_LIMIT_BYTES),
    )(ek, wk)

    # Finalize statistics (touches only 2*128 floats — pure plumbing).
    # Stats are of (e_enc - b); padded rows contributed exactly 0, so divide
    # by the true edge count.  mean(e_enc) = mu_shift + b cancels out of the
    # normalized output, so b is folded away entirely.
    n = jnp.float32(max(r, 1))                       # guard zero-edge graphs
    feat_sum = s1.reshape(pack, dout).sum(axis=0)
    feat_sumsq = s2.reshape(pack, dout).sum(axis=0)
    mu_shift = feat_sum / n
    var = jnp.maximum(feat_sumsq / n - mu_shift * mu_shift, 0.0)  # biased var
    scale = gamma.astype(jnp.float32) * lax.rsqrt(var + eps)
    shift = beta.astype(jnp.float32) - mu_shift * scale
    ss_k = jnp.concatenate(
        [_tile_vec(scale, pack), _tile_vec(shift, pack)], axis=0)   # (2, dk)

    # Pass 2: recompute encode + normalize.  "parallel" row axis (2-TC on
    # v7x), lane-dense full-width stores, single big HBM write.
    out = pl.pallas_call(
        _edge_norm_kernel,
        out_shape=jax.ShapeDtypeStruct((rp, dk), out_dtype),
        grid_spec=pltpu.PrefetchScalarGridSpec(
            num_scalar_prefetch=0,
            grid=grid,
            in_specs=[
                pl.BlockSpec((tp, dxk), lambda i: (i, 0)),
                pl.BlockSpec((dxk, dk), lambda i: (0, 0)),
                pl.BlockSpec((2, dk), lambda i: (0, 0)),    # [scale; shift]
            ],
            out_specs=pl.BlockSpec((tp, dk), lambda i: (i, 0)),
        ),
        compiler_params=pltpu.CompilerParams(
            dimension_semantics=("parallel",),
            vmem_limit_bytes=_VMEM_LIMIT_BYTES),
    )(ek, wk, ss_k)
    return _unpack_rows(out, pack, dout, r)


# ----------------------------------------------------------------------------
# FeatureEncoder forward: node encoder, edge encoder (+ fused edge BN)
# ----------------------------------------------------------------------------
def feature_encoder_forward(batch, params, *, eps=1e-5, out_dtype=jnp.float32):
    # Node and edge encoders use different weights, so each path is a separate
    # well-tiled kernel.
    x_enc = linear_encode(batch["x"], params["w_node"], params["b_node"],
                          out_dtype=out_dtype)
    e_enc = edge_encode_bn(batch["edge_attr"], params["w_edge"],
                           params["b_edge"], params["bn_gamma"],
                           params["bn_beta"], eps=eps, out_dtype=out_dtype)
    return {"x": x_enc, "edge_attr": e_enc}


# Pure-JAX reference for verification.
def _reference(batch, params, eps=1e-5):
    x = batch["x"] @ params["w_node"] + params["b_node"]
    e = batch["edge_attr"] @ params["w_edge"] + params["b_edge"]
    mean = e.mean(axis=0, keepdims=True)
    var = ((e - mean) ** 2).mean(axis=0, keepdims=True)
    e = (e - mean) / jnp.sqrt(var + eps) * params["bn_gamma"] + params["bn_beta"]
    return {"x": x, "edge_attr": e}


# TODO(synk): cfg-dependent encoder registry (e.g. Atom/Bond embedding encoders)
# and BN running-stat (momentum) buffers are not modeled; this implements the
# linear node/edge encoder + training-mode BN configuration.
if __name__ == "__main__":
    num_nodes = 16          # N
    num_edges = 16          # E
    dim_in_node = 4         # raw node feature dim (FeatureEncoder dim_in)
    dim_in_edge = 4         # raw edge feature dim
    dim_inner = 32          # cfg.gnn.dim_inner (== cfg.gnn.dim_edge here)

    key = jax.random.PRNGKey(0)
    k = jax.random.split(key, 8)

    batch = {
        "x": jax.random.normal(k[0], (num_nodes, dim_in_node), jnp.float32),
        "edge_attr": jax.random.normal(k[1], (num_edges, dim_in_edge),
                                       jnp.float32),
    }
    params = {
        "w_node": jax.random.normal(k[2], (dim_in_node, dim_inner),
                                    jnp.float32) * 0.1,
        "b_node": jax.random.normal(k[3], (dim_inner,), jnp.float32) * 0.1,
        "w_edge": jax.random.normal(k[4], (dim_in_edge, dim_inner),
                                    jnp.float32) * 0.1,
        "b_edge": jax.random.normal(k[5], (dim_inner,), jnp.float32) * 0.1,
        "bn_gamma": jnp.ones((dim_inner,), jnp.float32),
        "bn_beta": jnp.zeros((dim_inner,), jnp.float32),
    }

    out = feature_encoder_forward(batch, params)
    out = jax.tree_util.tree_map(jax.block_until_ready, out)

    ref = _reference(batch, params)
    assert jnp.allclose(out["x"], ref["x"], atol=1e-5, rtol=1e-5)
    assert jnp.allclose(out["edge_attr"], ref["edge_attr"], atol=1e-5, rtol=1e-5)

    print("KERNEL_OK")
</pallas_src>

<mosaic_0001>
module attributes {stable_mosaic.version = 11 : i64} {
  func.func @_linear_kernel(%arg0: i32, %arg1: memref<8x16xf32, #tpu.memory_space<vmem>>, %arg2: memref<16x128xf32, #tpu.memory_space<vmem>>, %arg3: memref<1x128xf32, #tpu.memory_space<vmem>>, %arg4: memref<8x128xf32, #tpu.memory_space<vmem>>) attributes {dimension_semantics = [#tpu.dimension_semantics<parallel>], iteration_bounds = array<i64: 1>, scalar_prefetch = 0 : i64, scratch_operands = 0 : i64, tpu.core_type = #tpu.core_type<tc>, window_params = [{transform_indices = @transform_0, window_bounds = array<i64: 8, 16>}, {pipeline_mode = #tpu.pipeline_mode<synchronous>, transform_indices = @transform_1, window_bounds = array<i64: 16, 128>}, {pipeline_mode = #tpu.pipeline_mode<synchronous>, transform_indices = @transform_2, window_bounds = array<i64: 1, 128>}, {transform_indices = @transform_3, window_bounds = array<i64: 8, 128>}]} {
    %c0 = arith.constant 0 : index
    %c0_0 = arith.constant 0 : index
    %0 = vector.load %arg1[%c0, %c0_0] : memref<8x16xf32, #tpu.memory_space<vmem>>, vector<8x16xf32>
    %c0_1 = arith.constant 0 : index
    %c0_2 = arith.constant 0 : index
    %1 = vector.load %arg2[%c0_1, %c0_2] : memref<16x128xf32, #tpu.memory_space<vmem>>, vector<16x128xf32>
    %cst = arith.constant dense<0.000000e+00> : vector<8x128xf32>
    %2 = tpu.matmul %0, %1, %cst {dimension_numbers = #tpu.dot_dimension_numbers<[1], [0], [0], [1], [0, 0, 1, 1], [], []>} : vector<8x16xf32>, vector<16x128xf32>, vector<8x128xf32> -> vector<8x128xf32>
    %c0_3 = arith.constant 0 : index
    %c0_4 = arith.constant 0 : index
    %3 = vector.load %arg3[%c0_3, %c0_4] : memref<1x128xf32, #tpu.memory_space<vmem>>, vector<1x128xf32>
    %4 = vector.broadcast %3 : vector<1x128xf32> to vector<8x128xf32>
    %5 = arith.addf %2, %4 : vector<8x128xf32>
    %c0_5 = arith.constant 0 : index
    %c0_6 = arith.constant 0 : index
    %6 = vector.load %arg4[%c0_5, %c0_6] : memref<8x128xf32, #tpu.memory_space<vmem>>, vector<8x128xf32>
    tpu.vector_store %arg4[%c0_5, %c0_6], %5 {strides = array<i32>} : memref<8x128xf32, #tpu.memory_space<vmem>>, vector<8x128xf32>,
    return
  }
  func.func @transform_0(%arg0: i32) -> (i32, i32) {
    %c0_i32 = arith.constant 0 : i32
    %c0_i32_0 = arith.constant 0 : i32
    return %arg0, %c0_i32 : i32, i32
  }
  func.func @transform_1(%arg0: i32) -> (i32, i32) {
    %c0_i32 = arith.constant 0 : i32
    %c0_i32_0 = arith.constant 0 : i32
    %c0_i32_1 = arith.constant 0 : i32
    return %c0_i32, %c0_i32_0 : i32, i32
  }
  func.func @transform_2(%arg0: i32) -> (i32, i32) {
    %c0_i32 = arith.constant 0 : i32
    %c0_i32_0 = arith.constant 0 : i32
    %c0_i32_1 = arith.constant 0 : i32
    return %c0_i32, %c0_i32_0 : i32, i32
  }
  func.func @transform_3(%arg0: i32) -> (i32, i32) {
    %c0_i32 = arith.constant 0 : i32
    %c0_i32_0 = arith.constant 0 : i32
    return %arg0, %c0_i32 : i32, i32
  }
}

</mosaic_0001>

<llo_original>
// kernel: tpu_custom_call.1
$region0: #{tpu_custom_call.1}
  #allocation0 [shape = 'u32[]', space=smem, size = 0x4, offset = 0x4, fixed_abs, tag = 'smem constant byte address 0x4 - core index']
  #allocation1 [shape = 'u32[72,128]{1,0:T(1,128)}', space=vmem, size = 0x9000, scoped, tag = 'internal scratch']
  %s0 = inlined_call_operand.hbm [shape: f32[8,16], index: 0, kind: input, shape index: {}]
  %s1 = inlined_call_operand.hbm [shape: f32[16,128], index: 1, kind: input, shape index: {}]
  %s2 = inlined_call_operand.vmem [shape: f32[1,128], index: 2, kind: input, shape index: {}]
  %s3 = inlined_call_operand.hbm [shape: f32[8,128], index: 3, kind: output, shape index: {}]
  %s4 = sld [smem:[#allocation0]]
  $region30: #{tpu_custom_call.1} parent=0
    _
  %s6 = ssub.s32 1, %s4
  %s7 = scalar_select 0, %s6, %s4
  $region1: #{tpu_custom_call.1} parent=0
    #allocation2 [shape = 'u8[4096]{0}', space=vmem, size = 0x1000, scoped, tag = 'input window, operand 0, single buffered']
    #allocation3 [shape = 's32[1]{0}', space=sflag, size = 0x4, scoped, tag = 'scoped memory for tpu_custom_call.1']
    #allocation4 [shape = 's32[1]{0}', space=sflag, size = 0x4, scoped, tag = 'scoped memory for tpu_custom_call.1']
    #allocation5 [shape = 'u8[8192]{0}', space=vmem, size = 0x2000, scoped, tag = 'input window, operand 1, single buffered']
    #allocation6 [shape = 's32[1]{0}', space=sflag, size = 0x4, scoped, tag = 'scoped memory for tpu_custom_call.1']
    #allocation7 [shape = 'u8[4096]{0}', space=vmem, size = 0x1000, scoped, tag = 'output window, operand 0, single buffered']
    %8 = vsyncpa [#allocation3], 0
    %9 = vsyncpa [#allocation6], 0
    %10 = vsyncpa [#allocation4], 0
    // Predicated region
    $region2: #{tpu_custom_call.1} parent=1 // pred_check
      _
    $region3: #{tpu_custom_call.1} parent=1 // pred_check_branch
      %12 = sbr.rel (0) target = $region5
    $region4: #{tpu_custom_call.1} parent=1 // pred_region
      %14 = vsyncadd [#allocation3], 0
      %s16 = sshll.u32 %s0, 4
      %s17 = int_to_ptr.hbm [resolvable:$true] %s16
      %s18 = sshll.u32 [#allocation2], 4
      %s19 = int_to_ptr.vmem [resolvable:$true] %s18
      %21 = dma.hbm_to_vmem [thread:$0]  %s17, 128, %s19, [#allocation3]
    $region5: #{tpu_custom_call.1} parent=1 // pred_fallthru
      _
    // Predicated region
    $region6: #{tpu_custom_call.1} parent=1 // pred_check
      _
    $region7: #{tpu_custom_call.1} parent=1 // pred_check_branch
      %23 = sbr.rel (0) target = $region9
    $region8: #{tpu_custom_call.1} parent=1 // pred_region
      %25 = vsyncadd [#allocation6], 0
      %s26 = sshll.u32 %s1, 4
      %s27 = int_to_ptr.hbm [resolvable:$true] %s26
      %s28 = sshll.u32 [#allocation5], 4
      %s29 = int_to_ptr.vmem [resolvable:$true] %s28
      %34 = dma.hbm_to_vmem [thread:$0]  %s27, 256, %s29, [#allocation6], 128, 128, 8
    $region9: #{tpu_custom_call.1} parent=1 // pred_fallthru
      _
    // Predicated region
    $region10: #{tpu_custom_call.1} parent=1 // pred_check
      _
    $region11: #{tpu_custom_call.1} parent=1 // pred_check_branch
      %36 = sbr.rel (0) target = $region13
    $region12: #{tpu_custom_call.1} parent=1 // pred_region
      _
    $region13: #{tpu_custom_call.1} parent=1 // pred_fallthru
      _
    // Predicated region
    $region14: #{tpu_custom_call.1} parent=1 // pred_check
      _
    $region15: #{tpu_custom_call.1} parent=1 // pred_check_branch
      %38 = sbr.rel (0) target = $region17
    $region16: #{tpu_custom_call.1} parent=1 // pred_region
      %40 = dma.done [#allocation3], 128
    $region17: #{tpu_custom_call.1} parent=1 // pred_fallthru
      _
    // Predicated region
    $region18: #{tpu_custom_call.1} parent=1 // pred_check
      _
    $region19: #{tpu_custom_call.1} parent=1 // pred_check_branch
      %42 = sbr.rel (0) target = $region21
    $region20: #{tpu_custom_call.1} parent=1 // pred_region
      %44 = dma.done [#allocation6], 256
    $region21: #{tpu_custom_call.1} parent=1 // pred_fallthru
      _
    %v45 = vld [vmem:[#allocation2] sm:$0xff]
    %v46 = vld [vmem:[#allocation5] sm:$0xff]
    %v47 = vld [vmem:[#allocation5 + $0x8] sm:$0xff]
    %v48 = vld [vmem:[%s2] sm:$0x1]
    %v50 = vperm.slane %v48, 0
    %vm52 = vcmask 130048
    %v54 = vsel %vm52, %v45, 0
    %56 = vmatpush.msra.mxu0 0.0
    %57 = vmatpush.msra.mxu0 0.0
    %58 = vmatpush.msra.mxu0 0.0
    %59 = vmatpush.msra.mxu0 0.0
    %60 = vmatpush.msra.mxu0 0.0
    %61 = vmatpush.msra.mxu0 0.0
    %62 = vmatpush.msra.mxu0 0.0
    %63 = vmatpush.msra.mxu0 0.0
    %64 = vmatpush.msra.mxu0 0.0
    %65 = vmatpush.msra.mxu0 0.0
    %66 = vmatpush.msra.mxu0 0.0
    %67 = vmatpush.msra.mxu0 0.0
    %68 = vmatpush.msra.mxu0 0.0
    %69 = vmatpush.msra.mxu0 0.0
    %70 = vmatpush.msra.mxu0 %v47
    %71 = vmatpush.msra.mxu0 %v46
    %72 = vmatmul.f32.gmra.mxu0 %v54
    %v73 = vpop.f32.mrf.mxu0
    %v74 = vadd.f32 %v50, %v73
    %75 = vdwg.mxu0
    %76 = vst [vmem:[#allocation7] sm:$0xff] %v74
    // Predicated region
    $region22: #{tpu_custom_call.1} parent=1 // pred_check
      _
    $region23: #{tpu_custom_call.1} parent=1 // pred_check_branch
      %78 = sbr.rel (0) target = $region25
    $region24: #{tpu_custom_call.1} parent=1 // pred_region
      %80 = vsyncadd [#allocation4], 0
      %s82 = sshll.u32 [#allocation7], 4
      %s83 = int_to_ptr.vmem [resolvable:$true] %s82
      %s84 = sshll.u32 %s3, 4
      %s85 = int_to_ptr.hbm [resolvable:$true] %s84
      %87 = dma.vmem_to_hbm [thread:$0]  %s83, 128, %s85, [#allocation4]
    $region25: #{tpu_custom_call.1} parent=1 // pred_fallthru
      _
    // Predicated region
    $region26: #{tpu_custom_call.1} parent=1 // pred_check
      _
    $region27: #{tpu_custom_call.1} parent=1 // pred_check_branch
      %89 = sbr.rel (0) target = $region29
    $region28: #{tpu_custom_call.1} parent=1 // pred_region
      %91 = dma.done [#allocation4], 128
    $region29: #{tpu_custom_call.1} parent=1 // pred_fallthru
      _
    %92 = vsyncpa [#allocation3], 1
    %93 = vsyncpa [#allocation6], 1
    %94 = vsyncpa [#allocation4], 1

</llo_original>
